<compile_context>
chip_gen: v7x
topology: tpu7x:2x2x1
jax: 0.10.0
libtpu: 0.0.40
codegen_flags: <defaults>
</compile_context>

<pallas_src>
import functools
import math

import numpy as np
import jax
import jax.numpy as jnp
from jax import lax
from jax.experimental import pallas as pl
from jax.experimental.pallas import tpu as pltpu


# --------------------------------------------------------------------------- #
# Small helpers
# --------------------------------------------------------------------------- #
def _round_up(x, m):
    return (x + m - 1) // m * m


def _next_pow2(n):
    return 1 << max(int(n) - 1, 0).bit_length()


def _vmem_limit_bytes():
    """Per-generation scoped-VMEM limit: ~3/4 of physical, capped at 100 MiB."""
    cap = 64 * 1024 * 1024                      # v7x-safe default (64 MiB / TC)
    try:
        cap = int(getattr(pltpu.get_tpu_info(), "vmem_capacity_bytes", cap))
    except Exception:
        pass
    return int(max(32 * 1024 * 1024, min(cap * 3 // 4, 100 * 1024 * 1024)))


def _pick_q_tile(batch, n, target=256, min_tile=32):
    """Power-of-two query tile, shrunk so the parallel grid has >= 4 points
    (keeps both v7x TensorCores busy at small batch / small N)."""
    tq = max(8, min(target, _next_pow2(n)))
    while tq > min_tile and batch * ((n + tq - 1) // tq) < 4:
        tq //= 2
    return tq


def _pick_n_tile(n_pad, tq, target=512):
    tn = tq
    while tn * 2 <= min(target, n_pad) and n_pad % (tn * 2) == 0:
        tn *= 2
    return tn


def _pick_k_tile(n_pad, target=512):
    tk = 128                                    # lane axis of the score tile
    while tk * 2 <= min(target, n_pad) and n_pad % (tk * 2) == 0:
        tk *= 2
    return tk


def _resident_kv_fits(n_pad, c, tq, cdt_bytes, limit):
    """Conservative pass-3 VMEM estimate with K/V fully resident per batch."""
    kv = 4 * n_pad * c * cdt_bytes              # K + V, double-buffered by the pipeline
    row = tq * n_pad * (4 + cdt_bytes)          # f32 scores + compute-dtype probabilities
    tiles = 8 * tq * c * 4                      # x / out tiles + q / attn f32 temporaries
    wts = 4 * c * c * cdt_bytes + 8 * c * 4     # Wq / W3 (double-buffered) + biases / affine
    return kv + row + tiles + wts <= int(limit * 0.85)


# --------------------------------------------------------------------------- #
# Pass 1: GroupNorm statistics — per-channel sum / sum-of-squares over N.
# (Padded tokens are zero, so they contribute nothing; the true count is used
#  in the host-side group combine.)
# --------------------------------------------------------------------------- #
def _gn_stats_kernel(x_ref, sum_ref, sq_ref, acc_sum, acc_sq):
    t = pl.program_id(1)

    @pl.when(t == 0)
    def _():
        acc_sum[...] = jnp.zeros_like(acc_sum)
        acc_sq[...] = jnp.zeros_like(acc_sq)

    x = x_ref[0].astype(jnp.float32)                       # (TN, C)
    acc_sum[...] += jnp.sum(x, axis=0, keepdims=True)      # sublane-direction reduce
    acc_sq[...] += jnp.sum(x * x, axis=0, keepdims=True)

    @pl.when(t == pl.num_programs(1) - 1)
    def _():
        sum_ref[0] = acc_sum[...]
        sq_ref[0] = acc_sq[...]


# --------------------------------------------------------------------------- #
# Pass 2: GroupNorm affine + K / V projection (Q is fused into pass 3).
# --------------------------------------------------------------------------- #
def _gn_kv_kernel(x_ref, scale_ref, shift_ref, wk_ref, bk_ref, wv_ref,
                  k_ref, v_ref):
    x = x_ref[0].astype(jnp.float32)                       # (TN, C)
    h = x * scale_ref[0] + shift_ref[0]                    # GroupNorm in f32
    hc = h.astype(wk_ref.dtype)
    k = jnp.dot(hc, wk_ref[...], preferred_element_type=jnp.float32) + bk_ref[0]
    v = jnp.dot(hc, wv_ref[...], preferred_element_type=jnp.float32)  # bv folded into b3_eff
    k_ref[0] = k.astype(k_ref.dtype)
    v_ref[0] = v.astype(v_ref.dtype)


# --------------------------------------------------------------------------- #
# Pass 3a: attention with K/V fully VMEM-resident per batch.
# Computes Q in-kernel from the residual x tile, the full (TQ, N_pad) score
# row, softmax, attn @ V, NIN_3 and the residual add.
# --------------------------------------------------------------------------- #
def _attn_resident_kernel(x_ref, scale_ref, shift_ref, wq_ref, bq_ref,
                          k_ref, v_ref, w3_ref, b3_ref, o_ref, *,
                          skip_rescale, bf16_softmax, approx_recip, n_real):
    n_pad = k_ref.shape[1]
    x = x_ref[0].astype(jnp.float32)                       # (TQ, C)
    h = x * scale_ref[0] + shift_ref[0]                    # GroupNorm affine (f32)

    # Fused Q projection (C^-1/2 already folded into Wq / bq): no HBM round trip.
    q = (jnp.dot(h.astype(wq_ref.dtype), wq_ref[...],
                 preferred_element_type=jnp.float32) + bq_ref[0])
    q = q.astype(k_ref.dtype)

    # Scores: contract the channel dims of q and k directly (q @ k^T on MXU).
    s = lax.dot_general(q, k_ref[0], (((1,), (1,)), ((), ())),
                        preferred_element_type=jnp.float32)      # (TQ, N_pad) f32
    if n_real != n_pad:                                          # mask padded keys
        kidx = lax.broadcasted_iota(jnp.int32, s.shape, 1)
        s = jnp.where(kidx < n_real, s, -1e30)

    m = jnp.max(s, axis=-1, keepdims=True)
    z = s - m
    if bf16_softmax:
        p = jnp.exp(z.astype(jnp.bfloat16))                      # EUP in bf16
        l = jnp.sum(p.astype(jnp.float32), axis=-1, keepdims=True)
    else:
        p = jnp.exp(z)
        l = jnp.sum(p, axis=-1, keepdims=True)

    attn = jnp.dot(p.astype(v_ref.dtype), v_ref[0],
                   preferred_element_type=jnp.float32)           # (TQ, C) f32
    attn = attn * pl.reciprocal(l, approx=approx_recip)

    h3 = jnp.dot(attn.astype(w3_ref.dtype), w3_ref[...],
                 preferred_element_type=jnp.float32) + b3_ref[0]
    out = x + h3
    if skip_rescale:
        out = out * (1.0 / math.sqrt(2.0))
    o_ref[0] = out.astype(o_ref.dtype)


# --------------------------------------------------------------------------- #
# Pass 3b: streamed fallback — flash-style online softmax over key tiles, used
# only when resident K/V would not fit the VMEM budget.
# --------------------------------------------------------------------------- #
def _attn_streamed_kernel(x_ref, scale_ref, shift_ref, wq_ref, bq_ref,
                          k_ref, v_ref, w3_ref, b3_ref, o_ref,
                          q_scr, m_scr, l_scr, acc_scr, *,
                          skip_rescale, bf16_softmax, approx_recip,
                          n_real, n_pad, tk):
    kj = pl.program_id(2)

    @pl.when(kj == 0)
    def _():
        x = x_ref[0].astype(jnp.float32)
        h = x * scale_ref[0] + shift_ref[0]
        q = (jnp.dot(h.astype(wq_ref.dtype), wq_ref[...],
                     preferred_element_type=jnp.float32) + bq_ref[0])
        q_scr[...] = q.astype(q_scr.dtype)
        m_scr[...] = jnp.full_like(m_scr, -jnp.inf)
        l_scr[...] = jnp.zeros_like(l_scr)
        acc_scr[...] = jnp.zeros_like(acc_scr)

    s = lax.dot_general(q_scr[...], k_ref[0], (((1,), (1,)), ((), ())),
                        preferred_element_type=jnp.float32)      # (TQ, TK) f32
    if n_real != n_pad:
        kidx = kj * tk + lax.broadcasted_iota(jnp.int32, s.shape, 1)
        s = jnp.where(kidx < n_real, s, -1e30)

    m_prev = m_scr[...]
    m_new = jnp.maximum(m_prev, jnp.max(s, axis=-1, keepdims=True))
    alpha = jnp.exp(m_prev - m_new)
    z = s - m_new
    if bf16_softmax:
        p = jnp.exp(z.astype(jnp.bfloat16))
        psum = jnp.sum(p.astype(jnp.float32), axis=-1, keepdims=True)
    else:
        p = jnp.exp(z)
        psum = jnp.sum(p, axis=-1, keepdims=True)
    l_scr[...] = alpha * l_scr[...] + psum
    acc_scr[...] = alpha * acc_scr[...] + jnp.dot(
        p.astype(v_ref.dtype), v_ref[0], preferred_element_type=jnp.float32)
    m_scr[...] = m_new

    @pl.when(kj == pl.num_programs(2) - 1)
    def _():
        attn = acc_scr[...] * pl.reciprocal(l_scr[...], approx=approx_recip)
        h3 = jnp.dot(attn.astype(w3_ref.dtype), w3_ref[...],
                     preferred_element_type=jnp.float32) + b3_ref[0]
        out = x_ref[0].astype(jnp.float32) + h3
        if skip_rescale:
            out = out * (1.0 / math.sqrt(2.0))
        o_ref[0] = out.astype(o_ref.dtype)


# --------------------------------------------------------------------------- #
# Wrappers
# --------------------------------------------------------------------------- #
def attn_block_pp_tokens(x_tok, params, *, skip_rescale=False, eps=1e-6,
                         compute_dtype=jnp.bfloat16, tq=None,
                         approx_recip=None, bf16_softmax=None, kv_resident=None):
    """Core forward on token-major input x_tok: (B, N, C) with N = H*W."""
    B, N, C = x_tok.shape
    G = min(C // 4, 32)
    cg = C // G
    cdt = compute_dtype
    cdt_is_bf16 = np.dtype(cdt) == np.dtype(jnp.bfloat16)
    if approx_recip is None:
        approx_recip = cdt_is_bf16
    if bf16_softmax is None:
        # TODO(synk): force False on v5e (no bf16 EUP/VPU) via chip detection.
        bf16_softmax = cdt_is_bf16

    vmem_limit = _vmem_limit_bytes()

    # ---- tiles & padding (lane/sublane aligned, megacore-aware) --------------
    if tq is None:
        tq = _pick_q_tile(B, N)
    n_align = tq * 128 // math.gcd(tq, 128)          # lcm(tq, 128)
    N_pad = _round_up(N, n_align)
    assert N_pad % tq == 0 and N_pad % 128 == 0
    tn = _pick_n_tile(N_pad, tq)
    x_pad = x_tok if N_pad == N else jnp.pad(x_tok, ((0, 0), (0, N_pad - N), (0, 0)))

    # ---- pass 1: per-channel sum / sum-of-squares over N ---------------------
    sums, sqs = pl.pallas_call(
        _gn_stats_kernel,
        out_shape=(jax.ShapeDtypeStruct((B, 1, C), jnp.float32),
                   jax.ShapeDtypeStruct((B, 1, C), jnp.float32)),
        grid=(B, N_pad // tn),
        in_specs=[pl.BlockSpec((1, tn, C), lambda b, t: (b, t, 0))],
        out_specs=(pl.BlockSpec((1, 1, C), lambda b, t: (b, 0, 0)),
                   pl.BlockSpec((1, 1, C), lambda b, t: (b, 0, 0))),
        scratch_shapes=[pltpu.VMEM((1, C), jnp.float32),
                        pltpu.VMEM((1, C), jnp.float32)],
        compiler_params=pltpu.CompilerParams(
            dimension_semantics=("parallel", "arbitrary"),
            vmem_limit_bytes=vmem_limit),
    )(x_pad)

    # Tiny (B, C) glue math: group stats -> per-channel affine scale/shift.
    cnt = float(N * cg)                                    # real token count
    gsum = sums.reshape(B, G, cg).sum(-1)
    gsq = sqs.reshape(B, G, cg).sum(-1)
    mean = gsum / cnt
    var = jnp.maximum(gsq / cnt - mean * mean, 0.0)
    rstd = 1.0 / jnp.sqrt(var + eps)
    mean_c = jnp.repeat(mean, cg, axis=-1)                 # (B, C)
    rstd_c = jnp.repeat(rstd, cg, axis=-1)
    gamma = params["gamma"].astype(jnp.float32)
    beta = params["beta"].astype(jnp.float32)
    gn_scale = (rstd_c * gamma[None, :]).reshape(B, 1, C)
    gn_shift = (beta[None, :] - mean_c * rstd_c * gamma[None, :]).reshape(B, 1, C)

    # ---- parameter packing ----------------------------------------------------
    attn_scale = float(C) ** (-0.5)
    wq = (params["wq"] * attn_scale).astype(cdt)                       # (C, C)
    bq = (params["bq"] * attn_scale).reshape(1, C).astype(jnp.float32)
    wk = params["wk"].astype(cdt)
    bk = params["bk"].reshape(1, C).astype(jnp.float32)
    wv = params["wv"].astype(cdt)
    w3 = params["w3"].astype(cdt)
    b3_eff = (params["bv"] @ params["w3"] + params["b3"]               # bv @ W3 + b3
              ).reshape(1, C).astype(jnp.float32)

    # ---- pass 2: fused GroupNorm-affine + K/V projection ----------------------
    k, v = pl.pallas_call(
        _gn_kv_kernel,
        out_shape=(jax.ShapeDtypeStruct((B, N_pad, C), cdt),) * 2,
        grid=(B, N_pad // tn),
        in_specs=[
            pl.BlockSpec((1, tn, C), lambda b, t: (b, t, 0)),   # x
            pl.BlockSpec((1, 1, C), lambda b, t: (b, 0, 0)),    # gn scale
            pl.BlockSpec((1, 1, C), lambda b, t: (b, 0, 0)),    # gn shift
            pl.BlockSpec((C, C), lambda b, t: (0, 0)),          # Wk
            pl.BlockSpec((1, C), lambda b, t: (0, 0)),          # bk
            pl.BlockSpec((C, C), lambda b, t: (0, 0)),          # Wv
        ],
        out_specs=(pl.BlockSpec((1, tn, C), lambda b, t: (b, t, 0)),) * 2,
        compiler_params=pltpu.CompilerParams(
            dimension_semantics=("parallel", "parallel"),
            vmem_limit_bytes=vmem_limit),
    )(x_pad, gn_scale, gn_shift, wk, bk, wv)

    # ---- pass 3: attention + NIN_3 + residual ---------------------------------
    if kv_resident is None:
        kv_resident = _resident_kv_fits(N_pad, C, tq, np.dtype(cdt).itemsize,
                                        vmem_limit)

    if kv_resident:
        kern = functools.partial(
            _attn_resident_kernel, skip_rescale=skip_rescale,
            bf16_softmax=bf16_softmax, approx_recip=approx_recip, n_real=N)
        out_pad = pl.pallas_call(
            kern,
            out_shape=jax.ShapeDtypeStruct((B, N_pad, C), x_tok.dtype),
            grid=(B, N_pad // tq),
            in_specs=[
                pl.BlockSpec((1, tq, C), lambda b, qi: (b, qi, 0)),     # x (residual + Q source)
                pl.BlockSpec((1, 1, C), lambda b, qi: (b, 0, 0)),       # gn scale
                pl.BlockSpec((1, 1, C), lambda b, qi: (b, 0, 0)),       # gn shift
                pl.BlockSpec((C, C), lambda b, qi: (0, 0)),             # Wq (scaled)
                pl.BlockSpec((1, C), lambda b, qi: (0, 0)),             # bq (scaled)
                pl.BlockSpec((1, N_pad, C), lambda b, qi: (b, 0, 0)),   # K resident
                pl.BlockSpec((1, N_pad, C), lambda b, qi: (b, 0, 0)),   # V resident
                pl.BlockSpec((C, C), lambda b, qi: (0, 0)),             # W3
                pl.BlockSpec((1, C), lambda b, qi: (0, 0)),             # b3_eff
            ],
            out_specs=pl.BlockSpec((1, tq, C), lambda b, qi: (b, qi, 0)),
            compiler_params=pltpu.CompilerParams(
                dimension_semantics=("parallel", "parallel"),
                vmem_limit_bytes=vmem_limit),
        )(x_pad, gn_scale, gn_shift, wq, bq, k, v, w3, b3_eff)
    else:
        tk = _pick_k_tile(N_pad)
        kern = functools.partial(
            _attn_streamed_kernel, skip_rescale=skip_rescale,
            bf16_softmax=bf16_softmax, approx_recip=approx_recip,
            n_real=N, n_pad=N_pad, tk=tk)
        out_pad = pl.pallas_call(
            kern,
            out_shape=jax.ShapeDtypeStruct((B, N_pad, C), x_tok.dtype),
            grid=(B, N_pad // tq, N_pad // tk),
            in_specs=[
                pl.BlockSpec((1, tq, C), lambda b, qi, kj: (b, qi, 0)),
                pl.BlockSpec((1, 1, C), lambda b, qi, kj: (b, 0, 0)),
                pl.BlockSpec((1, 1, C), lambda b, qi, kj: (b, 0, 0)),
                pl.BlockSpec((C, C), lambda b, qi, kj: (0, 0)),
                pl.BlockSpec((1, C), lambda b, qi, kj: (0, 0)),
                pl.BlockSpec((1, tk, C), lambda b, qi, kj: (b, kj, 0)),
                pl.BlockSpec((1, tk, C), lambda b, qi, kj: (b, kj, 0)),
                pl.BlockSpec((C, C), lambda b, qi, kj: (0, 0)),
                pl.BlockSpec((1, C), lambda b, qi, kj: (0, 0)),
            ],
            out_specs=pl.BlockSpec((1, tq, C), lambda b, qi, kj: (b, qi, 0)),
            scratch_shapes=[pltpu.VMEM((tq, C), cdt),            # q
                            pltpu.VMEM((tq, 1), jnp.float32),    # running max
                            pltpu.VMEM((tq, 1), jnp.float32),    # running sum
                            pltpu.VMEM((tq, C), jnp.float32)],   # accumulator
            compiler_params=pltpu.CompilerParams(
                dimension_semantics=("parallel", "parallel", "arbitrary"),
                vmem_limit_bytes=vmem_limit),
        )(x_pad, gn_scale, gn_shift, wq, bq, k, v, w3, b3_eff)

    return out_pad if N_pad == N else out_pad[:, :N, :]


def attn_block_pp(x_nchw, params, *, skip_rescale=False, eps=1e-6,
                  compute_dtype=jnp.bfloat16, tq=None,
                  approx_recip=None, bf16_softmax=None, kv_resident=None):
    """NCHW entry point matching the PyTorch module's interface."""
    B, C, H, W = x_nchw.shape
    N = H * W
    # TODO(synk): these two HBM transposes disappear for NHWC/token-major callers.
    x_tok = jnp.transpose(x_nchw, (0, 2, 3, 1)).reshape(B, N, C)
    out_tok = attn_block_pp_tokens(
        x_tok, params, skip_rescale=skip_rescale, eps=eps,
        compute_dtype=compute_dtype, tq=tq, approx_recip=approx_recip,
        bf16_softmax=bf16_softmax, kv_resident=kv_resident)
    return jnp.transpose(out_tok.reshape(B, H, W, C), (0, 3, 1, 2))


# --------------------------------------------------------------------------- #
# Pure-JAX reference mirroring the PyTorch forward exactly.
# --------------------------------------------------------------------------- #
def attn_block_pp_reference(x, params, *, skip_rescale=False, eps=1e-6):
    B, C, H, W = x.shape
    G = min(C // 4, 32)
    xg = x.reshape(B, G, C // G, H, W)
    mean = xg.mean(axis=(2, 3, 4), keepdims=True)
    var = jnp.square(xg - mean).mean(axis=(2, 3, 4), keepdims=True)
    h = (xg - mean) / jnp.sqrt(var + eps)
    h = (h.reshape(B, C, H, W) * params["gamma"][None, :, None, None]
         + params["beta"][None, :, None, None])

    def nin(t, w, b):
        return jnp.einsum('bchw,ck->bkhw', t, w) + b[None, :, None, None]

    q = nin(h, params["wq"], params["bq"])
    k = nin(h, params["wk"], params["bk"])
    v = nin(h, params["wv"], params["bv"])
    w_ = jnp.einsum('bchw,bcij->bhwij', q, k) * (float(C) ** -0.5)
    w_ = jax.nn.softmax(w_.reshape(B, H, W, H * W), axis=-1).reshape(B, H, W, H, W)
    hh = jnp.einsum('bhwij,bcij->bchw', w_, v)
    hh = nin(hh, params["w3"], params["b3"])
    out = x + hh
    if skip_rescale:
        out = out / jnp.sqrt(2.0)
    return out


def init_params(key, channels):
    """Deterministic synthetic parameters (shapes match the module)."""
    ks = jax.random.split(key, 10)
    scale = 1.0 / math.sqrt(channels)
    return {
        "gamma": 1.0 + 0.1 * jax.random.normal(ks[0], (channels,), jnp.float32),
        "beta": 0.1 * jax.random.normal(ks[1], (channels,), jnp.float32),
        "wq": scale * jax.random.normal(ks[2], (channels, channels), jnp.float32),
        "bq": 0.05 * jax.random.normal(ks[3], (channels,), jnp.float32),
        "wk": scale * jax.random.normal(ks[4], (channels, channels), jnp.float32),
        "bk": 0.05 * jax.random.normal(ks[5], (channels,), jnp.float32),
        "wv": scale * jax.random.normal(ks[6], (channels, channels), jnp.float32),
        "bv": 0.05 * jax.random.normal(ks[7], (channels,), jnp.float32),
        "w3": 0.1 * scale * jax.random.normal(ks[8], (channels, channels), jnp.float32),
        "b3": 0.05 * jax.random.normal(ks[9], (channels,), jnp.float32),
    }


if __name__ == "__main__":
    key = jax.random.PRNGKey(0)
    kx, kp = jax.random.split(key)

    B, C, H, W = 2, 4, 16, 16
    x = jax.random.normal(kx, (B, C, H, W), jnp.float32)
    params = init_params(kp, C)

    # A) production bf16 MXU path (resident K/V); loose tol from bf16 rounding.
    out_bf16 = jax.block_until_ready(
        attn_block_pp(x, params, skip_rescale=False, compute_dtype=jnp.bfloat16))
    ref = attn_block_pp_reference(x, params, skip_rescale=False)
    assert out_bf16.shape == (B, C, H, W)
    err_bf16 = float(jnp.max(jnp.abs(out_bf16 - ref)))
    assert err_bf16 < 3e-2, err_bf16

    # B) f32 path (resident K/V): tight check of the tiled rewrite.
    out_f32 = jax.block_until_ready(
        attn_block_pp(x, params, skip_rescale=True, compute_dtype=jnp.float32))
    ref2 = attn_block_pp_reference(x, params, skip_rescale=True)
    err_f32 = float(jnp.max(jnp.abs(out_f32 - ref2)))
    assert err_f32 < 1e-3, err_f32

    # C/D) non-multiple-of-128 spatial size -> padded N + key masking,
    # exercising both the resident and the streamed fallback kernels (f32).
    x2 = jax.random.normal(kx, (B, C, 12, 12), jnp.float32)
    ref3 = attn_block_pp_reference(x2, params, skip_rescale=False)
    out_res = jax.block_until_ready(
        attn_block_pp(x2, params, compute_dtype=jnp.float32))
    out_str = jax.block_until_ready(
        attn_block_pp(x2, params, compute_dtype=jnp.float32, kv_resident=False))
    err_res = float(jnp.max(jnp.abs(out_res - ref3)))
    err_str = float(jnp.max(jnp.abs(out_str - ref3)))
    assert err_res < 1e-3, err_res
    assert err_str < 1e-3, err_str

    print("KERNEL_OK")
</pallas_src>

<mosaic_0001>
module attributes {stable_mosaic.version = 11 : i64} {
  func.func @_gn_stats_kernel(%arg0: i32, %arg1: i32, %arg2: memref<1x256x4xf32, #tpu.memory_space<vmem>>, %arg3: memref<1x1x4xf32, #tpu.memory_space<vmem>>, %arg4: memref<1x1x4xf32, #tpu.memory_space<vmem>>, %arg5: memref<1x4xf32, #tpu.memory_space<vmem>>, %arg6: memref<1x4xf32, #tpu.memory_space<vmem>>) attributes {dimension_semantics = [#tpu.dimension_semantics<parallel>, #tpu.dimension_semantics<arbitrary>], iteration_bounds = array<i64: 2, 1>, scalar_prefetch = 0 : i64, scratch_operands = 2 : i64, tpu.core_type = #tpu.core_type<tc>, window_params = [{transform_indices = @transform_0, window_bounds = array<i64: 1, 256, 4>}, {transform_indices = @transform_1, window_bounds = array<i64: 1, 1, 4>}, {transform_indices = @transform_2, window_bounds = array<i64: 1, 1, 4>}]} {
    %c0_i32 = arith.constant 0 : i32
    %0 = arith.cmpi eq, %arg1, %c0_i32 : i32
    %1 = arith.extui %0 : i1 to i32
    %c0_i32_0 = arith.constant 0 : i32
    %2 = arith.cmpi ne, %1, %c0_i32_0 : i32
    scf.if %2 {
      %cst_14 = arith.constant 0.000000e+00 : f32
      %19 = vector.broadcast %cst_14 : f32 to vector<1x4xf32>
      %c0_15 = arith.constant 0 : index
      %c0_16 = arith.constant 0 : index
      %20 = vector.load %arg5[%c0_15, %c0_16] : memref<1x4xf32, #tpu.memory_space<vmem>>, vector<1x4xf32>
      tpu.vector_store %arg5[%c0_15, %c0_16], %19 {strides = array<i32>} : memref<1x4xf32, #tpu.memory_space<vmem>>, vector<1x4xf32>,
      %cst_17 = arith.constant 0.000000e+00 : f32
      %21 = vector.broadcast %cst_17 : f32 to vector<1x4xf32>
      %c0_18 = arith.constant 0 : index
      %c0_19 = arith.constant 0 : index
      %22 = vector.load %arg6[%c0_18, %c0_19] : memref<1x4xf32, #tpu.memory_space<vmem>>, vector<1x4xf32>
      tpu.vector_store %arg6[%c0_18, %c0_19], %21 {strides = array<i32>} : memref<1x4xf32, #tpu.memory_space<vmem>>, vector<1x4xf32>,
    } else {
    }
    %c0 = arith.constant 0 : index
    %c0_1 = arith.constant 0 : index
    %c0_2 = arith.constant 0 : index
    %3 = vector.load %arg2[%c0, %c0_1, %c0_2] : memref<1x256x4xf32, #tpu.memory_space<vmem>>, vector<1x256x4xf32>
    %4 = vector.shape_cast %3 : vector<1x256x4xf32> to vector<256x4xf32>
    %c0_3 = arith.constant 0 : index
    %c0_4 = arith.constant 0 : index
    %5 = vector.load %arg5[%c0_3, %c0_4] : memref<1x4xf32, #tpu.memory_space<vmem>>, vector<1x4xf32>
    %cst = arith.constant dense<0.000000e+00> : vector<4xf32>
    %6 = vector.multi_reduction <add>, %4, %cst [0] : vector<256x4xf32> to vector<4xf32>
    %7 = vector.shape_cast %6 : vector<4xf32> to vector<1x4xf32>
    %8 = arith.addf %5, %7 : vector<1x4xf32>
    %c0_5 = arith.constant 0 : index
    %c0_6 = arith.constant 0 : index
    %9 = vector.load %arg5[%c0_5, %c0_6] : memref<1x4xf32, #tpu.memory_space<vmem>>, vector<1x4xf32>
    tpu.vector_store %arg5[%c0_5, %c0_6], %8 {strides = array<i32>} : memref<1x4xf32, #tpu.memory_space<vmem>>, vector<1x4xf32>,
    %c0_7 = arith.constant 0 : index
    %c0_8 = arith.constant 0 : index
    %10 = vector.load %arg6[%c0_7, %c0_8] : memref<1x4xf32, #tpu.memory_space<vmem>>, vector<1x4xf32>
    %11 = arith.mulf %4, %4 : vector<256x4xf32>
    %cst_9 = arith.constant dense<0.000000e+00> : vector<4xf32>
    %12 = vector.multi_reduction <add>, %11, %cst_9 [0] : vector<256x4xf32> to vector<4xf32>
    %13 = vector.shape_cast %12 : vector<4xf32> to vector<1x4xf32>
    %14 = arith.addf %10, %13 : vector<1x4xf32>
    %c0_10 = arith.constant 0 : index
    %c0_11 = arith.constant 0 : index
    %15 = vector.load %arg6[%c0_10, %c0_11] : memref<1x4xf32, #tpu.memory_space<vmem>>, vector<1x4xf32>
    tpu.vector_store %arg6[%c0_10, %c0_11], %14 {strides = array<i32>} : memref<1x4xf32, #tpu.memory_space<vmem>>, vector<1x4xf32>,
    %c0_i32_12 = arith.constant 0 : i32
    %16 = arith.cmpi eq, %arg1, %c0_i32_12 : i32
    %17 = arith.extui %16 : i1 to i32
    %c0_i32_13 = arith.constant 0 : i32
    %18 = arith.cmpi ne, %17, %c0_i32_13 : i32
    scf.if %18 {
      %c0_14 = arith.constant 0 : index
      %c0_15 = arith.constant 0 : index
      %19 = vector.load %arg5[%c0_14, %c0_15] : memref<1x4xf32, #tpu.memory_space<vmem>>, vector<1x4xf32>
      %c0_16 = arith.constant 0 : index
      %c0_17 = arith.constant 0 : index
      %c0_18 = arith.constant 0 : index
      %20 = vector.load %arg3[%c0_16, %c0_17, %c0_18] : memref<1x1x4xf32, #tpu.memory_space<vmem>>, vector<1x1x4xf32>
      %21 = vector.shape_cast %20 : vector<1x1x4xf32> to vector<1x4xf32>
      %22 = vector.shape_cast %19 : vector<1x4xf32> to vector<1x1x4xf32>
      tpu.vector_store %arg3[%c0_16, %c0_17, %c0_18], %22 {strides = array<i32>} : memref<1x1x4xf32, #tpu.memory_space<vmem>>, vector<1x1x4xf32>,
      %c0_19 = arith.constant 0 : index
      %c0_20 = arith.constant 0 : index
      %23 = vector.load %arg6[%c0_19, %c0_20] : memref<1x4xf32, #tpu.memory_space<vmem>>, vector<1x4xf32>
      %c0_21 = arith.constant 0 : index
      %c0_22 = arith.constant 0 : index
      %c0_23 = arith.constant 0 : index
      %24 = vector.load %arg4[%c0_21, %c0_22, %c0_23] : memref<1x1x4xf32, #tpu.memory_space<vmem>>, vector<1x1x4xf32>
      %25 = vector.shape_cast %24 : vector<1x1x4xf32> to vector<1x4xf32>
      %26 = vector.shape_cast %23 : vector<1x4xf32> to vector<1x1x4xf32>
      tpu.vector_store %arg4[%c0_21, %c0_22, %c0_23], %26 {strides = array<i32>} : memref<1x1x4xf32, #tpu.memory_space<vmem>>, vector<1x1x4xf32>,
    } else {
    }
    return
  }
  func.func @transform_0(%arg0: i32, %arg1: i32) -> (i32, i32, i32) {
    %c0_i32 = arith.constant 0 : i32
    %c0_i32_0 = arith.constant 0 : i32
    return %arg0, %arg1, %c0_i32 : i32, i32, i32
  }
  func.func @transform_1(%arg0: i32, %arg1: i32) -> (i32, i32, i32) {
    %c0_i32 = arith.constant 0 : i32
    %c0_i32_0 = arith.constant 0 : i32
    %c0_i32_1 = arith.constant 0 : i32
    return %arg0, %c0_i32, %c0_i32_0 : i32, i32, i32
  }
  func.func @transform_2(%arg0: i32, %arg1: i32) -> (i32, i32, i32) {
    %c0_i32 = arith.constant 0 : i32
    %c0_i32_0 = arith.constant 0 : i32
    %c0_i32_1 = arith.constant 0 : i32
    return %arg0, %c0_i32, %c0_i32_0 : i32, i32, i32
  }
}

</mosaic_0001>

<llo_original>
// kernel: tpu_custom_call.1
$region0: #{tpu_custom_call.1}
  #allocation0 [shape = 'u32[]', space=smem, size = 0x4, offset = 0x4, fixed_abs, tag = 'smem constant byte address 0x4 - core index']
  #allocation1 [shape = 'u32[144,128]{1,0:T(1,128)}', space=vmem, size = 0x12000, scoped, tag = 'internal scratch']
  #allocation2 [shape = 'f32[1,4]{1,0:T(1,128)}', space=vmem, size = 0x200, scoped, tag = 'scratch operand']
  #allocation3 [shape = 'f32[1,4]{1,0:T(1,128)}', space=vmem, size = 0x200, scoped, tag = 'scratch operand']
  %s0 = inlined_call_operand.vmem [shape: f32[2,256,4], index: 0, kind: input, shape index: {}]
  %s1 = inlined_call_operand.hbm [shape: f32[2,1,4], index: 1, kind: output, shape index: {0}]
  %s2 = inlined_call_operand.hbm [shape: f32[2,1,4], index: 2, kind: output, shape index: {1}]
  %3 = xla_tuple %s1, %s2
  %s4 = sld [smem:[#allocation0]]
  $region53: #{tpu_custom_call.1} parent=0
    _
  %s6 = ssub.s32 1, %s4
  %s7 = scalar_select 0, %s6, %s4
  $region1: #{tpu_custom_call.1} parent=0
    #allocation4 [shape = 'u8[1024]{0}', space=vmem, size = 0x400, scoped, tag = 'output window, operand 0']
    #allocation5 [shape = 's32[2]{0}', space=sflag, size = 0x8, scoped, tag = 'scoped memory for tpu_custom_call.1']
    #allocation6 [shape = 'u8[1024]{0}', space=vmem, size = 0x400, scoped, tag = 'output window, operand 1']
    #allocation7 [shape = 's32[2]{0}', space=sflag, size = 0x8, scoped, tag = 'scoped memory for tpu_custom_call.1']
    %8 = vsyncpa [#allocation5], 0
    %s9 = scalar_lea.sflag [#allocation5], 1
    %10 = vsyncpa %s9, 0
    %11 = vsyncpa [#allocation7], 0
    %s12 = scalar_lea.sflag [#allocation7], 1
    %13 = vsyncpa %s12, 0
    loop: start=0, step=1, limit=4
    $region2: #{tpu_custom_call.1} parent=1 // loop_pre_header
      _
    $region3: #{tpu_custom_call.1} parent=1 // loop_header
      %s15 = sphi 0, %s19
      %p16 = scmp.ge.s32.totalorder %s15, 4
      %s22 = sphi 0, %s34
      %s23 = sphi 0, %s30
      %s24 = sphi 0, %s22
      %s25 = sphi 0, %s23
      %s26 = sphi 0, %s24
      %s27 = sphi 0, %s25
      %s39 = sphi 0, %s41
      %s42 = sphi 0, %s39
      %s43 = sphi 0, %s42
      %s59 = sphi 0, %s43
      %s65 = sphi 0, %s67
      %s68 = sphi 0, %s65
      %s69 = sphi 0, %s68
      %s85 = sphi 0, %s69
      %s91 = sphi 0, %s93
      %s94 = sphi 0, %s91
      %s95 = sphi 0, %s94
      %s111 = sphi 0, %s95
    $region4: #{tpu_custom_call.1} parent=1 // loop_header_branch
      %18 = sbr.rel (%p16) target = $region8
    $region5: #{tpu_custom_call.1} parent=1 // loop_body
      %s20 = ssub.s32 %s15, 1
      %s21 = ssub.s32 %s15, 2
      %s28 = sadd.s32 1, %s23
      %p29 = scmp.ge.s32.totalorder %s28, 1
      %s30 = scalar_select %p29, 0, %s28
      %s31 = sadd.s32 1, %s22
      %s32 = scalar_select %p29, %s31, %s22
      %p33 = scmp.ge.s32.totalorder %s32, 2
      %s34 = scalar_select %p33, 0, %s32
      %s35 = ssub.s32 %s22, %s34
      %s36 = ssub.s32 %s23, %s30
      %s37 = sor.u32 %s35, %s36
      %p38 = scmp.eq.s32.totalorder %s37, 0
      %s40 = sadd.s32 %s39, 1
      %s41 = scalar_select %p38, %s39, %s40
      %p44 = pneg %p38
      %p45 = scmp.eq.s32.totalorder %s15, 1
      %p46 = por %p44, %p45
      %p47 = scmp.ne.s32.totalorder %s39, %s42
      %p48 = scmp.eq.s32.totalorder %s15, 0
      %p49 = por %p47, %p48
      %p50 = scmp.ne.s32.totalorder %s39, %s42
      %p51 = scmp.eq.s32.totalorder %s20, 1
      %p52 = por %p50, %p51
      %p53 = scmp.ne.s32.totalorder %s42, %s43
      %p54 = scmp.eq.s32.totalorder %s20, 0
      %p55 = por %p53, %p54
      %p56 = scmp.ne.s32.totalorder %s42, %s43
      %p57 = scmp.eq.s32.totalorder %s21, 1
      %p58 = por %p56, %p57
      %p60 = scmp.ne.s32.totalorder %s43, %s59
      %p61 = scmp.eq.s32.totalorder %s21, 0
      %p62 = por %p60, %p61
      %s63 = ssub.s32 %s22, %s34
      %p64 = scmp.eq.s32.totalorder %s63, 0
      %s66 = sadd.s32 %s65, 1
      %s67 = scalar_select %p64, %s65, %s66
      %p70 = pneg %p64
      %p71 = scmp.eq.s32.totalorder %s15, 1
      %p72 = por %p70, %p71
      %p73 = scmp.ne.s32.totalorder %s65, %s68
      %p74 = scmp.eq.s32.totalorder %s15, 0
      %p75 = por %p73, %p74
      %p76 = scmp.ne.s32.totalorder %s65, %s68
      %p77 = scmp.eq.s32.totalorder %s20, 1
      %p78 = por %p76, %p77
      %p79 = scmp.ne.s32.totalorder %s68, %s69
      %p80 = scmp.eq.s32.totalorder %s20, 0
      %p81 = por %p79, %p80
      %p82 = scmp.ne.s32.totalorder %s68, %s69
      %p83 = scmp.eq.s32.totalorder %s21, 1
      %p84 = por %p82, %p83
      %p86 = scmp.ne.s32.totalorder %s69, %s85
      %p87 = scmp.eq.s32.totalorder %s21, 0
      %p88 = por %p86, %p87
      %s89 = ssub.s32 %s22, %s34
      %p90 = scmp.eq.s32.totalorder %s89, 0
      %s92 = sadd.s32 %s91, 1
      %s93 = scalar_select %p90, %s91, %s92
      %p96 = pneg %p90
      %p97 = scmp.eq.s32.totalorder %s15, 1
      %p98 = por %p96, %p97
      %p99 = scmp.ne.s32.totalorder %s91, %s94
      %p100 = scmp.eq.s32.totalorder %s15, 0
      %p101 = por %p99, %p100
      %p102 = scmp.ne.s32.totalorder %s91, %s94
      %p103 = scmp.eq.s32.totalorder %s20, 1
      %p104 = por %p102, %p103
      %p105 = scmp.ne.s32.totalorder %s94, %s95
      %p106 = scmp.eq.s32.totalorder %s20, 0
      %p107 = por %p105, %p106
      %p108 = scmp.ne.s32.totalorder %s94, %s95
      %p109 = scmp.eq.s32.totalorder %s21, 1
      %p110 = por %p108, %p109
      %p112 = scmp.ne.s32.totalorder %s95, %s111
      %p113 = scmp.eq.s32.totalorder %s21, 0
      %p114 = por %p112, %p113
      %p115 = scmp.le.s32.totalorder 1, %s15
      %p116 = scmp.lt.s32.totalorder %s15, 3
      %p117 = pnand %p115, %p116
      %p118 = pneg %p117
      // Predicated region
      $region9: #{tpu_custom_call.1} parent=5 // pred_check
        _
      $region10: #{tpu_custom_call.1} parent=5 // pred_check_branch
        %120 = sbr.rel (%p117) target = $region12
      $region11: #{tpu_custom_call.1} parent=5 // pred_region
        %s121 = ssub.s32 %s15, 1
      $region12: #{tpu_custom_call.1} parent=5 // pred_fallthru
        _
      %p122 = scmp.lt.s32.totalorder %s15, 2
      // Predicated region
      $region13: #{tpu_custom_call.1} parent=5 // pred_check
        %p123 = pneg %p122
      $region14: #{tpu_custom_call.1} parent=5 // pred_check_branch
        %125 = sbr.rel (%p123) target = $region16
      $region15: #{tpu_custom_call.1} parent=5 // pred_region
        // Predicated region
        $region17: #{tpu_custom_call.1} parent=15 // pred_check
          %p126 = pneg %p49
        $region18: #{tpu_custom_call.1} parent=15 // pred_check_branch
          %128 = sbr.rel (%p126) target = $region20
        $region19: #{tpu_custom_call.1} parent=15 // pred_region
          %s129 = smul.u32 32, %s23
          %p130 = scmp.lt.s32.totalorder %s22, 1
          %s131 = scalar_select %p130, %s22, 1
          %p132 = scmp.lt.s32.totalorder %s129, 31
          %s133 = scalar_select %p132, %s129, 31
          %s134 = smul.addr %s131, 32
          %s135 = sadd.s32 %s133, %s134
          %s136 = smul.addr %s135, 8
          %s137 = scalar_lea.vmem %s0, %s136
          %s138 = smul.u32 32, %s23
        $region20: #{tpu_custom_call.1} parent=15 // pred_fallthru
          _
      $region16: #{tpu_custom_call.1} parent=5 // pred_fallthru
        _
      %p139 = scmp.le.s32.totalorder 1, %s15
      %p140 = scmp.lt.s32.totalorder %s15, 3
      %p141 = pnand %p139, %p140
      %p142 = pneg %p141
      // Predicated region
      $region21: #{tpu_custom_call.1} parent=5 // pred_check
        _
      $region22: #{tpu_custom_call.1} parent=5 // pred_check_branch
        %144 = sbr.rel (%p141) target = $region24
      $region23: #{tpu_custom_call.1} parent=5 // pred_region
        %s145 = ssub.s32 %s15, 1
        %s146 = smul.u32 32, %s25
        %p147 = scmp.lt.s32.totalorder %s24, 1
        %s148 = scalar_select %p147, %s24, 1
        %p149 = scmp.lt.s32.totalorder %s146, 31
        %s150 = scalar_select %p149, %s146, 31
        %s151 = smul.addr %s148, 32
        %s152 = sadd.s32 %s150, %s151
        %s153 = smul.addr %s152, 8
        %s154 = scalar_lea.vmem %s0, %s153
        %p155 = pneg %p55
        %p156 = pneg %p52
        %p157 = pneg %p81
        %p158 = pneg %p78
        %s159 = sand.u32 %s68, 1
        %s160 = scalar_lea.sflag [#allocation5], %s159
        %s161 = sand.u32 %s68, 1
        %s162 = scalar_lea.vmem [#allocation4], %s161
        %p163 = pneg %p107
        %p164 = pneg %p104
        %s165 = sand.u32 %s94, 1
        %s166 = scalar_lea.sflag [#allocation7], %s165
        %s167 = sand.u32 %s94, 1
        %s168 = scalar_lea.vmem [#allocation6], %s167
        %s169 = smul.u32 32, %s25
        %p170 = scmp.lt.s32.totalorder %s24, 1
        %s171 = scalar_select %p170, %s24, 1
        %p172 = scmp.lt.s32.totalorder %s169, 31
        %s173 = scalar_select %p172, %s169, 31
        %s174 = smul.addr %s171, 32
        %s175 = sadd.s32 %s173, %s174
        %s176 = smul.addr %s175, 8
        %s177 = scalar_lea.vmem %s0, %s176
        %s178 = smul.u32 32, %s25
        %p179 = scmp.eq.s32.totalorder %s25, 0
        // Predicated region
        $region25: #{tpu_custom_call.1} parent=23 // pred_check
          %p180 = pneg %p179
        $region26: #{tpu_custom_call.1} parent=23 // pred_check_branch
          %182 = sbr.rel (%p180) target = $region28
        $region27: #{tpu_custom_call.1} parent=23 // pred_region
          %vm183 = vcmask 24576
          %184 = vst.msk [vmem:[#allocation2] sm:$0x1] %vm183, 0.0
          %185 = vst.msk [vmem:[#allocation3] sm:$0x1] %vm183, 0.0
        $region28: #{tpu_custom_call.1} parent=23 // pred_fallthru
          _
        %v186 = vld [vmem:[%s177] sm:$0xff]
        %v187 = vld [vmem:[%s177 + $0x8] sm:$0xff]
        %v188 = vld [vmem:[%s177 + $0x10] sm:$0xff]
        %v189 = vld [vmem:[%s177 + $0x18] sm:$0xff]
        %v190 = vld [vmem:[%s177 + $0x20] sm:$0xff]
        %v191 = vld [vmem:[%s177 + $0x28] sm:$0xff]
        %v192 = vld [vmem:[%s177 + $0x30] sm:$0xff]
        %v193 = vld [vmem:[%s177 + $0x38] sm:$0xff]
        %v194 = vld [vmem:[%s177 + $0x40] sm:$0xff]
        %v195 = vld [vmem:[%s177 + $0x48] sm:$0xff]
        %v196 = vld [vmem:[%s177 + $0x50] sm:$0xff]
        %v197 = vld [vmem:[%s177 + $0x58] sm:$0xff]
        %v198 = vld [vmem:[%s177 + $0x60] sm:$0xff]
        %v199 = vld [vmem:[%s177 + $0x68] sm:$0xff]
        %v200 = vld [vmem:[%s177 + $0x70] sm:$0xff]
        %v201 = vld [vmem:[%s177 + $0x78] sm:$0xff]
        %v202 = vld [vmem:[%s177 + $0x80] sm:$0xff]
        %v203 = vld [vmem:[%s177 + $0x88] sm:$0xff]
        %v204 = vld [vmem:[%s177 + $0x90] sm:$0xff]
        %v205 = vld [vmem:[%s177 + $0x98] sm:$0xff]
        %v206 = vld [vmem:[%s177 + $0xa0] sm:$0xff]
        %v207 = vld [vmem:[%s177 + $0xa8] sm:$0xff]
        %v208 = vld [vmem:[%s177 + $0xb0] sm:$0xff]
        %v209 = vld [vmem:[%s177 + $0xb8] sm:$0xff]
        %v210 = vld [vmem:[%s177 + $0xc0] sm:$0xff]
        %v211 = vld [vmem:[%s177 + $0xc8] sm:$0xff]
        %v212 = vld [vmem:[%s177 + $0xd0] sm:$0xff]
        %v213 = vld [vmem:[%s177 + $0xd8] sm:$0xff]
        %v214 = vld [vmem:[%s177 + $0xe0] sm:$0xff]
        %v215 = vld [vmem:[%s177 + $0xe8] sm:$0xff]
        %v216 = vld [vmem:[%s177 + $0xf0] sm:$0xff]
        %v217 = vld [vmem:[%s177 + $0xf8] sm:$0xff]
        %v218 = vld [vmem:[#allocation2] sm:$0x1]
        %vm219 = vcmask 31744
        %v220 = vsel %vm219, %v186, 0.0
        %v221 = vsel %vm219, %v187, 0.0
        %v222 = vadd.f32 %v220, %v221
        %v223 = vsel %vm219, %v188, 0.0
        %v224 = vadd.f32 %v222, %v223
        %v225 = vsel %vm219, %v189, 0.0
        %v226 = vadd.f32 %v224, %v225
        %v227 = vsel %vm219, %v190, 0.0
        %v228 = vadd.f32 %v226, %v227
        %v229 = vsel %vm219, %v191, 0.0
        %v230 = vadd.f32 %v228, %v229
        %v231 = vsel %vm219, %v192, 0.0
        %v232 = vadd.f32 %v230, %v231
        %v233 = vsel %vm219, %v193, 0.0
        %v234 = vadd.f32 %v232, %v233
        %v235 = vsel %vm219, %v194, 0.0
        %v236 = vadd.f32 %v234, %v235
        %v237 = vsel %vm219, %v195, 0.0
        %v238 = vadd.f32 %v236, %v237
        %v239 = vsel %vm219, %v196, 0.0
        %v240 = vadd.f32 %v238, %v239
        %v241 = vsel %vm219, %v197, 0.0
        %v242 = vadd.f32 %v240, %v241
        %v243 = vsel %vm219, %v198, 0.0
        %v244 = vadd.f32 %v242, %v243
        %v245 = vsel %vm219, %v199, 0.0
        %v246 = vadd.f32 %v244, %v245
        %v247 = vsel %vm219, %v200, 0.0
        %v248 = vadd.f32 %v246, %v247
        %v249 = vsel %vm219, %v201, 0.0
        %v250 = vadd.f32 %v248, %v249
        %v251 = vsel %vm219, %v202, 0.0
        %v252 = vadd.f32 %v250, %v251
        %v253 = vsel %vm219, %v203, 0.0
        %v254 = vadd.f32 %v252, %v253
        %v255 = vsel %vm219, %v204, 0.0
        %v256 = vadd.f32 %v254, %v255
        %v257 = vsel %vm219, %v205, 0.0
        %v258 = vadd.f32 %v256, %v257
        %v259 = vsel %vm219, %v206, 0.0
        %v260 = vadd.f32 %v258, %v259
        %v261 = vsel %vm219, %v207, 0.0
        %v262 = vadd.f32 %v260, %v261
        %v263 = vsel %vm219, %v208, 0.0
        %v264 = vadd.f32 %v262, %v263
        %v265 = vsel %vm219, %v209, 0.0
        %v266 = vadd.f32 %v264, %v265
        %v267 = vsel %vm219, %v210, 0.0
        %v268 = vadd.f32 %v266, %v267
        %v269 = vsel %vm219, %v211, 0.0
        %v270 = vadd.f32 %v268, %v269
        %v271 = vsel %vm219, %v212, 0.0
        %v272 = vadd.f32 %v270, %v271
        %v273 = vsel %vm219, %v213, 0.0
        %v274 = vadd.f32 %v272, %v273
        %v275 = vsel %vm219, %v214, 0.0
        %v276 = vadd.f32 %v274, %v275
        %v277 = vsel %vm219, %v215, 0.0
        %v278 = vadd.f32 %v276, %v277
        %v279 = vsel %vm219, %v216, 0.0
        %v280 = vadd.f32 %v278, %v279
        %v281 = vsel %vm219, %v217, 0.0
        %v282 = vadd.f32 %v280, %v281
        %v283 = vrot.slane %v282, 4
        %v284 = vadd.f32 %v282, %v283
        %v285 = vrot.slane %v284, 2
        %v286 = vadd.f32 %v284, %v285
        %v287 = vrot.slane %v286, 1
        %v288 = vadd.f32 %v286, %v287
        %v289 = vadd.f32 %v218, %v288
        %vm290 = vcmask 24576
        %291 = vst.msk [vmem:[#allocation2] sm:$0x1] %vm290, %v289
        %v292 = vld [vmem:[#allocation3] sm:$0x1]
        %v293 = vmul.f32 %v186, %v186
        %v294 = vmul.f32 %v187, %v187
        %v295 = vmul.f32 %v188, %v188
        %v296 = vmul.f32 %v189, %v189
        %v297 = vmul.f32 %v190, %v190
        %v298 = vmul.f32 %v191, %v191
        %v299 = vmul.f32 %v192, %v192
        %v300 = vmul.f32 %v193, %v193
        %v301 = vmul.f32 %v194, %v194
        %v302 = vmul.f32 %v195, %v195
        %v303 = vmul.f32 %v196, %v196
        %v304 = vmul.f32 %v197, %v197
        %v305 = vmul.f32 %v198, %v198
        %v306 = vmul.f32 %v199, %v199
        %v307 = vmul.f32 %v200, %v200
        %v308 = vmul.f32 %v201, %v201
        %v309 = vmul.f32 %v202, %v202
        %v310 = vmul.f32 %v203, %v203
        %v311 = vmul.f32 %v204, %v204
        %v312 = vmul.f32 %v205, %v205
        %v313 = vmul.f32 %v206, %v206
        %v314 = vmul.f32 %v207, %v207
        %v315 = vmul.f32 %v208, %v208
        %v316 = vmul.f32 %v209, %v209
        %v317 = vmul.f32 %v210, %v210
        %v318 = vmul.f32 %v211, %v211
        %v319 = vmul.f32 %v212, %v212
        %v320 = vmul.f32 %v213, %v213
        %v321 = vmul.f32 %v214, %v214
        %v322 = vmul.f32 %v215, %v215
        %v323 = vmul.f32 %v216, %v216
        %v324 = vmul.f32 %v217, %v217
        %v325 = vsel %vm219, %v293, 0.0
        %v326 = vsel %vm219, %v294, 0.0
        %v327 = vadd.f32 %v325, %v326
        %v328 = vsel %vm219, %v295, 0.0
        %v329 = vadd.f32 %v327, %v328
        %v330 = vsel %vm219, %v296, 0.0
        %v331 = vadd.f32 %v329, %v330
        %v332 = vsel %vm219, %v297, 0.0
        %v333 = vadd.f32 %v331, %v332
        %v334 = vsel %vm219, %v298, 0.0
        %v335 = vadd.f32 %v333, %v334
        %v336 = vsel %vm219, %v299, 0.0
        %v337 = vadd.f32 %v335, %v336
        %v338 = vsel %vm219, %v300, 0.0
        %v339 = vadd.f32 %v337, %v338
        %v340 = vsel %vm219, %v301, 0.0
        %v341 = vadd.f32 %v339, %v340
        %v342 = vsel %vm219, %v302, 0.0
        %v343 = vadd.f32 %v341, %v342
        %v344 = vsel %vm219, %v303, 0.0
        %v345 = vadd.f32 %v343, %v344
        %v346 = vsel %vm219, %v304, 0.0
        %v347 = vadd.f32 %v345, %v346
        %v348 = vsel %vm219, %v305, 0.0
        %v349 = vadd.f32 %v347, %v348
        %v350 = vsel %vm219, %v306, 0.0
        %v351 = vadd.f32 %v349, %v350
        %v352 = vsel %vm219, %v307, 0.0
        %v353 = vadd.f32 %v351, %v352
        %v354 = vsel %vm219, %v308, 0.0
        %v355 = vadd.f32 %v353, %v354
        %v356 = vsel %vm219, %v309, 0.0
        %v357 = vadd.f32 %v355, %v356
        %v358 = vsel %vm219, %v310, 0.0
        %v359 = vadd.f32 %v357, %v358
        %v360 = vsel %vm219, %v311, 0.0
        %v361 = vadd.f32 %v359, %v360
        %v362 = vsel %vm219, %v312, 0.0
        %v363 = vadd.f32 %v361, %v362
        %v364 = vsel %vm219, %v313, 0.0
        %v365 = vadd.f32 %v363, %v364
        %v366 = vsel %vm219, %v314, 0.0
        %v367 = vadd.f32 %v365, %v366
        %v368 = vsel %vm219, %v315, 0.0
        %v369 = vadd.f32 %v367, %v368
        %v370 = vsel %vm219, %v316, 0.0
        %v371 = vadd.f32 %v369, %v370
        %v372 = vsel %vm219, %v317, 0.0
        %v373 = vadd.f32 %v371, %v372
        %v374 = vsel %vm219, %v318, 0.0
        %v375 = vadd.f32 %v373, %v374
        %v376 = vsel %vm219, %v319, 0.0
        %v377 = vadd.f32 %v375, %v376
        %v378 = vsel %vm219, %v320, 0.0
        %v379 = vadd.f32 %v377, %v378
        %v380 = vsel %vm219, %v321, 0.0
        %v381 = vadd.f32 %v379, %v380
        %v382 = vsel %vm219, %v322, 0.0
        %v383 = vadd.f32 %v381, %v382
        %v384 = vsel %vm219, %v323, 0.0
        %v385 = vadd.f32 %v383, %v384
        %v386 = vsel %vm219, %v324, 0.0
        %v387 = vadd.f32 %v385, %v386
        %v388 = vrot.slane %v387, 4
        %v389 = vadd.f32 %v387, %v388
        %v390 = vrot.slane %v389, 2
        %v391 = vadd.f32 %v389, %v390
        %v392 = vrot.slane %v391, 1
        %v393 = vadd.f32 %v391, %v392
        %v394 = vadd.f32 %v292, %v393
        %395 = vst.msk [vmem:[#allocation3] sm:$0x1] %vm290, %v394
        // Predicated region
        $region29: #{tpu_custom_call.1} parent=23 // pred_check
          %p396 = pneg %p179
        $region30: #{tpu_custom_call.1} parent=23 // pred_check_branch
          %398 = sbr.rel (%p396) target = $region32
        $region31: #{tpu_custom_call.1} parent=23 // pred_region
          %v399 = vld [vmem:[#allocation2] sm:$0x1]
          %400 = vst.msk [vmem:[%s162] sm:$0x1] %vm290, %v399
          %v401 = vld [vmem:[#allocation3] sm:$0x1]
          %402 = vst.msk [vmem:[%s168] sm:$0x1] %vm290, %v401
        $region32: #{tpu_custom_call.1} parent=23 // pred_fallthru
          _
        %s403 = sand.u32 %s68, 1
        %s404 = scalar_lea.sflag [#allocation5], %s403
        %s405 = sand.u32 %s68, 1
        %s406 = scalar_lea.vmem [#allocation4], %s405
        %s407 = sand.u32 %s94, 1
        %s408 = scalar_lea.sflag [#allocation7], %s407
        %s409 = sand.u32 %s94, 1
        %s410 = scalar_lea.vmem [#allocation6], %s409
        // Predicated region
        $region33: #{tpu_custom_call.1} parent=23 // pred_check
          %p411 = pneg %p78
        $region34: #{tpu_custom_call.1} parent=23 // pred_check_branch
          %413 = sbr.rel (%p411) target = $region36
        $region35: #{tpu_custom_call.1} parent=23 // pred_region
          %s415 = ssub.s32 16, 16
          %416 = vsyncadd %s404, %s415
          %s417 = smul.addr %s24, 16
          %s418 = scalar_lea.hbm %s1, %s417
          %s420 = sshll.u32 %s406, 4
          %s421 = int_to_ptr.vmem [resolvable:$true] %s420
          %423 = dma.vmem_to_hbm [thread:$0]  %s421, 16, %s418, %s404
        $region36: #{tpu_custom_call.1} parent=23 // pred_fallthru
          _
        // Predicated region
        $region37: #{tpu_custom_call.1} parent=23 // pred_check
          %p424 = pneg %p104
        $region38: #{tpu_custom_call.1} parent=23 // pred_check_branch
          %426 = sbr.rel (%p424) target = $region40
        $region39: #{tpu_custom_call.1} parent=23 // pred_region
          %s428 = ssub.s32 16, 16
          %429 = vsyncadd %s408, %s428
          %s430 = smul.addr %s24, 16
          %s431 = scalar_lea.hbm %s2, %s430
          %s433 = sshll.u32 %s410, 4
          %s434 = int_to_ptr.vmem [resolvable:$true] %s433
          %436 = dma.vmem_to_hbm [thread:$0]  %s434, 16, %s431, %s408
        $region40: #{tpu_custom_call.1} parent=23 // pred_fallthru
          _
      $region24: #{tpu_custom_call.1} parent=5 // pred_fallthru
        _
      %p437 = scmp.le.s32.totalorder 2, %s15
      // Predicated region
      $region41: #{tpu_custom_call.1} parent=5 // pred_check
        %p438 = pneg %p437
      $region42: #{tpu_custom_call.1} parent=5 // pred_check_branch
        %440 = sbr.rel (%p438) target = $region44
      $region43: #{tpu_custom_call.1} parent=5 // pred_region
        %s441 = ssub.s32 %s15, 2
        // Predicated region
        $region45: #{tpu_custom_call.1} parent=43 // pred_check
          %p442 = pneg %p84
        $region46: #{tpu_custom_call.1} parent=43 // pred_check_branch
          %444 = sbr.rel (%p442) target = $region48
        $region47: #{tpu_custom_call.1} parent=43 // pred_region
          %s445 = sand.u32 %s69, 1
          %s446 = scalar_lea.sflag [#allocation5], %s445
          %s447 = sand.u32 %s69, 1
          %s448 = scalar_lea.vmem [#allocation4], %s447
          %449 = dma.done %s446, 16
        $region48: #{tpu_custom_call.1} parent=43 // pred_fallthru
          _
        // Predicated region
        $region49: #{tpu_custom_call.1} parent=43 // pred_check
          %p450 = pneg %p110
        $region50: #{tpu_custom_call.1} parent=43 // pred_check_branch
          %452 = sbr.rel (%p450) target = $region52
        $region51: #{tpu_custom_call.1} parent=43 // pred_region
          %s453 = sand.u32 %s95, 1
          %s454 = scalar_lea.sflag [#allocation7], %s453
          %s455 = sand.u32 %s95, 1
          %s456 = scalar_lea.vmem [#allocation6], %s455
          %457 = dma.done %s454, 16
        $region52: #{tpu_custom_call.1} parent=43 // pred_fallthru
          _
      $region44: #{tpu_custom_call.1} parent=5 // pred_fallthru
        _
    $region6: #{tpu_custom_call.1} parent=1 // loop_footer
      %s19 = sadd.s32 1, %s15
    $region7: #{tpu_custom_call.1} parent=1 // loop_footer_branch
      %14 = sbr.rel target = $region3
    $region8: #{tpu_custom_call.1} parent=1 // loop_exit
      _
    %458 = vsyncpa [#allocation5], 1
    %s459 = scalar_lea.sflag [#allocation5], 1
    %460 = vsyncpa %s459, 1
    %461 = vsyncpa [#allocation7], 1
    %s462 = scalar_lea.sflag [#allocation7], 1
    %463 = vsyncpa %s462, 1

</llo_original>
